<compile_context>
chip_gen: v6e
topology: v6e:2x2x1
jax: 0.10.0
libtpu: 0.0.40
codegen_flags: <defaults>
</compile_context>

<pallas_src>
import jax
import jax.numpy as jnp
import numpy as np
from jax.experimental import pallas as pl
from jax.experimental.pallas import tpu as pltpu


def _round_up(x, m):
    return ((x + m - 1) // m) * m


def _choose_tiling(n_tokens, cap_tokens, chunk_tokens):
    """Pick (tile, chunk) for the token/lane axis.

    tile  : lanes per grid step (multiple of `chunk`, or the full extent for
            small problems) -- sized to amortize the ~0.35us/step pipeline
            overhead while staying far under v7x's 32 MiB scoped VMEM.
    chunk : lanes per inner compute sub-chunk (bounds live intermediates).
    """
    chunk = max(128, _round_up(int(chunk_tokens), 128))
    cap = max(chunk, (int(cap_tokens) // chunk) * chunk)
    if n_tokens <= chunk:
        # Single full-extent block (lane dim == array dim is always legal).
        return n_tokens, n_tokens
    if n_tokens <= cap:
        # Keep a few (even) grid steps when there is enough work so the
        # "parallel" axis can be sharded across v7x's two TensorCores.
        if n_tokens >= 8 * chunk:
            steps = 4
        elif n_tokens >= 2 * chunk:
            steps = 2
        else:
            steps = 1
        return _round_up(pl.cdiv(n_tokens, steps), chunk), chunk
    return cap, chunk


def _make_kernel(n_chunks, chunk):
    def kernel(pos_ref, mask_ref, w1_ref, b1_ref, w2_ref, b2_ref, out_ref):
        # Tiny resident weight/bias blocks: load once, hoisted out of the loop
        # (JAX does not CSE broadcasts/loads across iterations).
        w1_t = w1_ref[...]          # (H, 3)
        b1 = b1_ref[...]            # (H, 1)
        w2_t = w2_ref[...]          # (3, H)
        b2 = b2_ref[...]            # (3, 1)

        # Static unroll over 128-aligned lane sub-chunks of the (3, tile) block:
        # the (H, chunk) hidden activation stays register/VMEM-small no matter
        # how large the DMA tile is.
        for c in range(n_chunks):
            sl = slice(c * chunk, (c + 1) * chunk)      # static, 128-aligned
            x_t = pos_ref[:, sl]                        # (3, chunk)
            m_t = mask_ref[:, sl]                       # (1, chunk)

            # Layer 1 on the MXU (K=3).  MXU utilization at K=3 is poor, but the
            # MXU is otherwise idle and issues on the vector-extended slot; the
            # saturated VALU slot is left with only bias + ReLU (+ mask below).
            h = jnp.dot(w1_t, x_t, preferred_element_type=jnp.float32) + b1
            h = jnp.maximum(h, 0.0)                     # (H, chunk)

            # Layer 2 on the MXU: (3, H) @ (H, chunk) -> lane-dense (3, chunk).
            y = jnp.dot(w2_t, h, preferred_element_type=jnp.float32) + b2

            # Mask broadcasts over the 3 channel rows; lane-dense unmasked vst.
            out_ref[:, sl] = y * m_t

    return kernel


def positions_mlp2(pos, node_mask, w1, b1, w2, b2, *, row_tile=65536, row_chunk=1024):
    """pos: (B, N, 3), node_mask: (B, N). Returns (B, N, 3)."""
    B, N, C = pos.shape
    assert C == 3, "PositionsMLP2 expects 3-D positions"
    H = w1.shape[1]
    M = B * N

    # Channel-major (lane-dense) operands: tokens on the 128-wide lane axis.
    # These two transposes are the only wrapper-side layout ops left (no pads).
    pos_t = pos.reshape(M, 3).astype(jnp.float32).T        # (3, M)
    mask_t = node_mask.reshape(1, M).astype(jnp.float32)    # (1, M)
    w1_t = w1.astype(jnp.float32).T                          # (H, 3)
    b1_c = b1.astype(jnp.float32).reshape(H, 1)              # (H, 1)
    w2_t = w2.astype(jnp.float32).T                          # (3, H)
    b2_c = b2.astype(jnp.float32).reshape(3, 1)              # (3, 1)

    tile, chunk = _choose_tiling(M, row_tile, row_chunk)
    n_chunks = tile // chunk
    grid = (pl.cdiv(M, tile),)          # partial last block handled by Pallas

    out_t = pl.pallas_call(
        _make_kernel(n_chunks, chunk),
        out_shape=jax.ShapeDtypeStruct((3, M), jnp.float32),
        grid_spec=pltpu.PrefetchScalarGridSpec(
            num_scalar_prefetch=0,
            grid=grid,
            in_specs=[
                pl.BlockSpec((3, tile), lambda i: (0, i)),   # pos   (channel-major)
                pl.BlockSpec((1, tile), lambda i: (0, i)),   # mask
                pl.BlockSpec((H, 3), lambda i: (0, 0)),      # W1^T  (resident)
                pl.BlockSpec((H, 1), lambda i: (0, 0)),      # b1
                pl.BlockSpec((3, H), lambda i: (0, 0)),      # W2^T  (resident)
                pl.BlockSpec((3, 1), lambda i: (0, 0)),      # b2
            ],
            out_specs=pl.BlockSpec((3, tile), lambda i: (0, i)),
        ),
        compiler_params=pltpu.CompilerParams(
            # Token blocks are independent -> shardable across v7x's two TCs.
            dimension_semantics=("parallel",),
        ),
    )(pos_t, mask_t, w1_t, b1_c, w2_t, b2_c)

    return out_t.T.reshape(B, N, 3)


def _init_params(key, hidden_dim):
    """Deterministic init mimicking nn.Linear default (uniform +/- 1/sqrt(fan_in))."""
    k1, k2, k3, k4 = jax.random.split(key, 4)
    bound1 = 1.0 / np.sqrt(3.0)
    bound2 = 1.0 / np.sqrt(hidden_dim)
    # Stored already transposed for x @ W layout (like torch weight.T).
    w1 = jax.random.uniform(k1, (3, hidden_dim), jnp.float32, -bound1, bound1)
    b1 = jax.random.uniform(k2, (hidden_dim,), jnp.float32, -bound1, bound1)
    w2 = jax.random.uniform(k3, (hidden_dim, 3), jnp.float32, -bound2, bound2)
    b2 = jax.random.uniform(k4, (3,), jnp.float32, -bound2, bound2)
    return w1, b1, w2, b2


def _reference(pos, node_mask, w1, b1, w2, b2):
    h = jnp.maximum(pos @ w1 + b1, 0.0)
    return (h @ w2 + b2) * node_mask[..., None]


if __name__ == "__main__":
    key = jax.random.PRNGKey(0)
    k_pos, k_mask, k_params = jax.random.split(key, 3)

    B, N, hidden_dim = 2, 8, 32
    pos = jax.random.normal(k_pos, (B, N, 3), jnp.float32)
    node_mask = (jax.random.uniform(k_mask, (B, N)) > 0.3).astype(jnp.float32)
    w1, b1, w2, b2 = _init_params(k_params, hidden_dim)

    # Small-shape check (single full-extent block).
    out = jax.block_until_ready(positions_mlp2(pos, node_mask, w1, b1, w2, b2))
    ref = _reference(pos, node_mask, w1, b1, w2, b2)
    np.testing.assert_allclose(np.asarray(out), np.asarray(ref), rtol=1e-5, atol=1e-5)

    # Larger check exercising the multi-step grid, the partial (out-of-bounds)
    # last block, and the multi-chunk inner loop.
    B2, N2 = 4, 600                      # M = 2400 -> 2 grid steps, 2 chunks/tile
    pos2 = jax.random.normal(k_pos, (B2, N2, 3), jnp.float32)
    mask2 = (jax.random.uniform(k_mask, (B2, N2)) > 0.5).astype(jnp.float32)
    out2 = jax.block_until_ready(positions_mlp2(pos2, mask2, w1, b1, w2, b2))
    ref2 = _reference(pos2, mask2, w1, b1, w2, b2)
    np.testing.assert_allclose(np.asarray(out2), np.asarray(ref2), rtol=1e-5, atol=1e-5)

    print("KERNEL_OK")
</pallas_src>

<mosaic_0001>
module attributes {stable_mosaic.version = 11 : i64} {
  func.func @kernel(%arg0: i32, %arg1: memref<3x16xf32, #tpu.memory_space<vmem>>, %arg2: memref<1x16xf32, #tpu.memory_space<vmem>>, %arg3: memref<32x3xf32, #tpu.memory_space<vmem>>, %arg4: memref<32x1xf32, #tpu.memory_space<vmem>>, %arg5: memref<3x32xf32, #tpu.memory_space<vmem>>, %arg6: memref<3x1xf32, #tpu.memory_space<vmem>>, %arg7: memref<3x16xf32, #tpu.memory_space<vmem>>) attributes {dimension_semantics = [#tpu.dimension_semantics<parallel>], iteration_bounds = array<i64: 1>, scalar_prefetch = 0 : i64, scratch_operands = 0 : i64, tpu.core_type = #tpu.core_type<tc>, window_params = [{transform_indices = @transform_0, window_bounds = array<i64: 3, 16>}, {transform_indices = @transform_1, window_bounds = array<i64: 1, 16>}, {pipeline_mode = #tpu.pipeline_mode<synchronous>, transform_indices = @transform_2, window_bounds = array<i64: 32, 3>}, {pipeline_mode = #tpu.pipeline_mode<synchronous>, transform_indices = @transform_3, window_bounds = array<i64: 32, 1>}, {pipeline_mode = #tpu.pipeline_mode<synchronous>, transform_indices = @transform_4, window_bounds = array<i64: 3, 32>}, {pipeline_mode = #tpu.pipeline_mode<synchronous>, transform_indices = @transform_5, window_bounds = array<i64: 3, 1>}, {transform_indices = @transform_6, window_bounds = array<i64: 3, 16>}]} {
    %c0 = arith.constant 0 : index
    %c0_0 = arith.constant 0 : index
    %0 = vector.load %arg3[%c0, %c0_0] : memref<32x3xf32, #tpu.memory_space<vmem>>, vector<32x3xf32>
    %c0_1 = arith.constant 0 : index
    %c0_2 = arith.constant 0 : index
    %1 = vector.load %arg4[%c0_1, %c0_2] : memref<32x1xf32, #tpu.memory_space<vmem>>, vector<32x1xf32>
    %c0_3 = arith.constant 0 : index
    %c0_4 = arith.constant 0 : index
    %2 = vector.load %arg5[%c0_3, %c0_4] : memref<3x32xf32, #tpu.memory_space<vmem>>, vector<3x32xf32>
    %c0_5 = arith.constant 0 : index
    %c0_6 = arith.constant 0 : index
    %3 = vector.load %arg6[%c0_5, %c0_6] : memref<3x1xf32, #tpu.memory_space<vmem>>, vector<3x1xf32>
    %c0_7 = arith.constant 0 : index
    %c0_8 = arith.constant 0 : index
    %4 = vector.load %arg1[%c0_7, %c0_8] : memref<3x16xf32, #tpu.memory_space<vmem>>, vector<3x16xf32>
    %c0_9 = arith.constant 0 : index
    %c0_10 = arith.constant 0 : index
    %5 = vector.load %arg2[%c0_9, %c0_10] : memref<1x16xf32, #tpu.memory_space<vmem>>, vector<1x16xf32>
    %cst = arith.constant dense<0.000000e+00> : vector<32x16xf32>
    %6 = tpu.matmul %0, %4, %cst {dimension_numbers = #tpu.dot_dimension_numbers<[1], [0], [0], [1], [0, 0, 1, 1], [], []>} : vector<32x3xf32>, vector<3x16xf32>, vector<32x16xf32> -> vector<32x16xf32>
    %7 = vector.broadcast %1 : vector<32x1xf32> to vector<32x16xf32>
    %8 = arith.addf %6, %7 : vector<32x16xf32>
    %cst_11 = arith.constant 0.000000e+00 : f32
    %9 = vector.broadcast %cst_11 : f32 to vector<32x16xf32>
    %10 = arith.maximumf %8, %9 : vector<32x16xf32>
    %cst_12 = arith.constant dense<0.000000e+00> : vector<3x16xf32>
    %11 = tpu.matmul %2, %10, %cst_12 {dimension_numbers = #tpu.dot_dimension_numbers<[1], [0], [0], [1], [0, 0, 1, 1], [], []>} : vector<3x32xf32>, vector<32x16xf32>, vector<3x16xf32> -> vector<3x16xf32>
    %12 = vector.broadcast %3 : vector<3x1xf32> to vector<3x16xf32>
    %13 = arith.addf %11, %12 : vector<3x16xf32>
    %14 = vector.broadcast %5 : vector<1x16xf32> to vector<3x16xf32>
    %15 = arith.mulf %13, %14 : vector<3x16xf32>
    %c0_13 = arith.constant 0 : index
    %c0_14 = arith.constant 0 : index
    %16 = vector.load %arg7[%c0_13, %c0_14] : memref<3x16xf32, #tpu.memory_space<vmem>>, vector<3x16xf32>
    tpu.vector_store %arg7[%c0_13, %c0_14], %15 {strides = array<i32>} : memref<3x16xf32, #tpu.memory_space<vmem>>, vector<3x16xf32>,
    return
  }
  func.func @transform_0(%arg0: i32) -> (i32, i32) {
    %c0_i32 = arith.constant 0 : i32
    %c0_i32_0 = arith.constant 0 : i32
    return %c0_i32, %arg0 : i32, i32
  }
  func.func @transform_1(%arg0: i32) -> (i32, i32) {
    %c0_i32 = arith.constant 0 : i32
    %c0_i32_0 = arith.constant 0 : i32
    return %c0_i32, %arg0 : i32, i32
  }
  func.func @transform_2(%arg0: i32) -> (i32, i32) {
    %c0_i32 = arith.constant 0 : i32
    %c0_i32_0 = arith.constant 0 : i32
    %c0_i32_1 = arith.constant 0 : i32
    return %c0_i32, %c0_i32_0 : i32, i32
  }
  func.func @transform_3(%arg0: i32) -> (i32, i32) {
    %c0_i32 = arith.constant 0 : i32
    %c0_i32_0 = arith.constant 0 : i32
    %c0_i32_1 = arith.constant 0 : i32
    return %c0_i32, %c0_i32_0 : i32, i32
  }
  func.func @transform_4(%arg0: i32) -> (i32, i32) {
    %c0_i32 = arith.constant 0 : i32
    %c0_i32_0 = arith.constant 0 : i32
    %c0_i32_1 = arith.constant 0 : i32
    return %c0_i32, %c0_i32_0 : i32, i32
  }
  func.func @transform_5(%arg0: i32) -> (i32, i32) {
    %c0_i32 = arith.constant 0 : i32
    %c0_i32_0 = arith.constant 0 : i32
    %c0_i32_1 = arith.constant 0 : i32
    return %c0_i32, %c0_i32_0 : i32, i32
  }
  func.func @transform_6(%arg0: i32) -> (i32, i32) {
    %c0_i32 = arith.constant 0 : i32
    %c0_i32_0 = arith.constant 0 : i32
    return %c0_i32, %arg0 : i32, i32
  }
}

</mosaic_0001>

<llo_original>
// kernel: tpu_custom_call.1
$region0: #{tpu_custom_call.1}
  #allocation0 [shape = 'u32[]', space=smem, size = 0x4, offset = 0x4, fixed_abs, tag = 'smem constant byte address 0x4 - core index']
  #allocation1 [shape = 'u32[144,128]{1,0:T(1,128)}', space=vmem, size = 0x12000, scoped, tag = 'internal scratch']
  %s0 = inlined_call_operand.vmem [shape: f32[3,16], index: 0, kind: input, shape index: {}]
  %s1 = inlined_call_operand.vmem [shape: f32[1,16], index: 1, kind: input, shape index: {}]
  %s2 = inlined_call_operand.vmem [shape: f32[32,3], index: 2, kind: input, shape index: {}]
  %s3 = inlined_call_operand.vmem [shape: f32[32,1], index: 3, kind: input, shape index: {}]
  %s4 = inlined_call_operand.vmem [shape: f32[3,32], index: 4, kind: input, shape index: {}]
  %s5 = inlined_call_operand.vmem [shape: f32[3,1], index: 5, kind: input, shape index: {}]
  %s6 = inlined_call_operand.hbm [shape: f32[3,16], index: 6, kind: output, shape index: {}]
  %s7 = sld [smem:[#allocation0]]
  $region34: #{tpu_custom_call.1} parent=0
    _
  %s9 = ssub.s32 1, %s7
  %s10 = scalar_select 0, %s9, %s7
  $region1: #{tpu_custom_call.1} parent=0
    #allocation2 [shape = 'u8[2048]{0}', space=vmem, size = 0x800, scoped, tag = 'output window, operand 0, single buffered']
    #allocation3 [shape = 's32[1]{0}', space=sflag, size = 0x4, scoped, tag = 'scoped memory for tpu_custom_call.1']
    %11 = vsyncpa [#allocation3], 0
    // Predicated region
    $region2: #{tpu_custom_call.1} parent=1 // pred_check
      _
    $region3: #{tpu_custom_call.1} parent=1 // pred_check_branch
      %13 = sbr.rel (0) target = $region5
    $region4: #{tpu_custom_call.1} parent=1 // pred_region
      _
    $region5: #{tpu_custom_call.1} parent=1 // pred_fallthru
      _
    // Predicated region
    $region6: #{tpu_custom_call.1} parent=1 // pred_check
      _
    $region7: #{tpu_custom_call.1} parent=1 // pred_check_branch
      %15 = sbr.rel (0) target = $region9
    $region8: #{tpu_custom_call.1} parent=1 // pred_region
      _
    $region9: #{tpu_custom_call.1} parent=1 // pred_fallthru
      _
    // Predicated region
    $region10: #{tpu_custom_call.1} parent=1 // pred_check
      _
    $region11: #{tpu_custom_call.1} parent=1 // pred_check_branch
      %17 = sbr.rel (0) target = $region13
    $region12: #{tpu_custom_call.1} parent=1 // pred_region
      _
    $region13: #{tpu_custom_call.1} parent=1 // pred_fallthru
      _
    // Predicated region
    $region14: #{tpu_custom_call.1} parent=1 // pred_check
      _
    $region15: #{tpu_custom_call.1} parent=1 // pred_check_branch
      %19 = sbr.rel (0) target = $region17
    $region16: #{tpu_custom_call.1} parent=1 // pred_region
      _
    $region17: #{tpu_custom_call.1} parent=1 // pred_fallthru
      _
    // Predicated region
    $region18: #{tpu_custom_call.1} parent=1 // pred_check
      _
    $region19: #{tpu_custom_call.1} parent=1 // pred_check_branch
      %21 = sbr.rel (0) target = $region21
    $region20: #{tpu_custom_call.1} parent=1 // pred_region
      _
    $region21: #{tpu_custom_call.1} parent=1 // pred_fallthru
      _
    // Predicated region
    $region22: #{tpu_custom_call.1} parent=1 // pred_check
      _
    $region23: #{tpu_custom_call.1} parent=1 // pred_check_branch
      %23 = sbr.rel (0) target = $region25
    $region24: #{tpu_custom_call.1} parent=1 // pred_region
      _
    $region25: #{tpu_custom_call.1} parent=1 // pred_fallthru
      _
    %v24 = vld [vmem:[%s2] sm:$0xff]
    %v25 = vld [vmem:[%s2 + $0x8] sm:$0xff]
    %v26 = vld [vmem:[%s2 + $0x10] sm:$0xff]
    %v27 = vld [vmem:[%s2 + $0x18] sm:$0xff]
    %v28 = vld [vmem:[%s3] sm:$0xff]
    %v29 = vld [vmem:[%s3 + $0x8] sm:$0xff]
    %v30 = vld [vmem:[%s3 + $0x10] sm:$0xff]
    %v31 = vld [vmem:[%s3 + $0x18] sm:$0xff]
    %v32 = vld [vmem:[%s4] sm:$0x7]
    %v33 = vld [vmem:[%s5] sm:$0x7]
    %v34 = vld [vmem:[%s0] sm:$0x7]
    %v35 = vld [vmem:[%s1] sm:$0x1]
    %37 = vset.pattern.permute.xlu0 0
    %38 = vperm.xlu0 %37, %v28
    %v39 = vpop.permute.xlu0 %38
    %42 = vset.pattern.permute.xlu0 0
    %43 = vperm.xlu0 %42, %v29
    %v44 = vpop.permute.xlu0 %43
    %47 = vset.pattern.permute.xlu0 0
    %48 = vperm.xlu0 %47, %v30
    %v49 = vpop.permute.xlu0 %48
    %52 = vset.pattern.permute.xlu0 0
    %53 = vperm.xlu0 %52, %v31
    %v54 = vpop.permute.xlu0 %53
    %vm56 = vcmask 23552
    %v58 = vsel %vm56, %v24, 0
    %v61 = vsel %vm56, %v25, 0
    %v64 = vsel %vm56, %v26, 0
    %v67 = vsel %vm56, %v27, 0
    %vm69 = vcmask 1042432
    %v71 = vsel %vm69, %v34, 0
    %73 = vmatprep.subr.mxu0 0.0
    %74 = vmatpush1.msra.mxu0 0.0
    %75 = vmatprep.subr.mxu0 0.0
    %76 = vmatpush1.msra.mxu0 0.0
    %77 = vmatprep.subr.mxu0 0.0
    %78 = vmatpush1.msra.mxu0 0.0
    %79 = vmatprep.subr.mxu0 0.0
    %80 = vmatpush1.msra.mxu0 0.0
    %81 = vmatprep.subr.mxu0 0.0
    %82 = vmatpush1.msra.mxu0 0.0
    %83 = vmatprep.subr.mxu0 0.0
    %84 = vmatpush1.msra.mxu0 0.0
    %85 = vmatprep.subr.mxu0 0.0
    %86 = vmatpush1.msra.mxu0 0.0
    %87 = vmatprep.subr.mxu0 0.0
    %88 = vmatpush1.msra.mxu0 0.0
    %89 = vmatprep.subr.mxu0 0.0
    %90 = vmatpush1.msra.mxu0 0.0
    %91 = vmatprep.subr.mxu0 0.0
    %92 = vmatpush1.msra.mxu0 0.0
    %93 = vmatprep.subr.mxu0 0.0
    %94 = vmatpush1.msra.mxu0 0.0
    %95 = vmatprep.subr.mxu0 0.0
    %96 = vmatpush1.msra.mxu0 0.0
    %97 = vmatprep.subr.mxu0 0.0
    %98 = vmatpush1.msra.mxu0 0.0
    %99 = vmatprep.subr.mxu0 0.0
    %100 = vmatpush1.msra.mxu0 0.0
    %101 = vmatprep.subr.mxu0 0.0
    %102 = vmatpush1.msra.mxu0 0.0
    %103 = vmatprep.subr.mxu0 0.0
    %104 = vmatpush1.msra.mxu0 %v71
    %105 = vmatprep.subr.mxu0 0.0
    %106 = vmatpush2.msra.mxu0 0.0
    %107 = vmatprep.subr.mxu0 0.0
    %108 = vmatpush2.msra.mxu0 0.0
    %109 = vmatprep.subr.mxu0 0.0
    %110 = vmatpush2.msra.mxu0 0.0
    %111 = vmatprep.subr.mxu0 0.0
    %112 = vmatpush2.msra.mxu0 0.0
    %113 = vmatprep.subr.mxu0 0.0
    %114 = vmatpush2.msra.mxu0 0.0
    %115 = vmatprep.subr.mxu0 0.0
    %116 = vmatpush2.msra.mxu0 0.0
    %117 = vmatprep.subr.mxu0 0.0
    %118 = vmatpush2.msra.mxu0 0.0
    %119 = vmatprep.subr.mxu0 0.0
    %120 = vmatpush2.msra.mxu0 0.0
    %121 = vmatprep.subr.mxu0 0.0
    %122 = vmatpush2.msra.mxu0 0.0
    %123 = vmatprep.subr.mxu0 0.0
    %124 = vmatpush2.msra.mxu0 0.0
    %125 = vmatprep.subr.mxu0 0.0
    %126 = vmatpush2.msra.mxu0 0.0
    %127 = vmatprep.subr.mxu0 0.0
    %128 = vmatpush2.msra.mxu0 0.0
    %129 = vmatprep.subr.mxu0 0.0
    %130 = vmatpush2.msra.mxu0 0.0
    %131 = vmatprep.subr.mxu0 0.0
    %132 = vmatpush2.msra.mxu0 0.0
    %133 = vmatprep.subr.mxu0 0.0
    %134 = vmatpush2.msra.mxu0 0.0
    %135 = vmatprep.subr.mxu0 0.0
    %136 = vmatpush2.msra.mxu0 0.0
    %137 = vmatprep.mubr.f32.mxu0 0.0
    %138 = vmatmul.mubr.f32.gmra.mxu0 %v58
    %v139 = vpop.f32.mrf.mxu0
    %v140 = vadd.f32 %v39, %v139
    %v141 = vpop.f32.mrf.mxu0
    %142 = vmatprep.mubr.f32.mxu0 0.0
    %143 = vmatmul.mubr.f32.gmra.mxu0 %v61
    %v144 = vpop.f32.mrf.mxu0
    %v145 = vadd.f32 %v44, %v144
    %v146 = vpop.f32.mrf.mxu0
    %147 = vmatprep.mubr.f32.mxu0 0.0
    %148 = vmatmul.mubr.f32.gmra.mxu0 %v64
    %v149 = vpop.f32.mrf.mxu0
    %v150 = vadd.f32 %v49, %v149
    %v151 = vpop.f32.mrf.mxu0
    %152 = vmatprep.mubr.f32.mxu0 0.0
    %153 = vmatmul.mubr.f32.gmra.mxu0 %v67
    %v154 = vpop.f32.mrf.mxu0
    %v155 = vadd.f32 %v54, %v154
    %v156 = vpop.f32.mrf.mxu0
    %157 = vdwg.mxu0
    %v158 = vmax.f32 %v140, 0.0
    %v159 = vmax.f32 %v145, 0.0
    %v160 = vmax.f32 %v150, 0.0
    %v161 = vmax.f32 %v155, 0.0
    %163 = vset.pattern.permute.xlu0 0
    %164 = vperm.xlu0 %163, %v33
    %v165 = vpop.permute.xlu0 %164
    %vm167 = vcmask 261120
    %v169 = vsel %vm167, %v32, 0
    %171 = vmatprep.subr.mxu0 0.0
    %172 = vmatpush1.msra.mxu0 0.0
    %173 = vmatprep.subr.mxu0 0.0
    %174 = vmatpush1.msra.mxu0 0.0
    %175 = vmatprep.subr.mxu0 0.0
    %176 = vmatpush1.msra.mxu0 0.0
    %177 = vmatprep.subr.mxu0 0.0
    %178 = vmatpush1.msra.mxu0 0.0
    %179 = vmatprep.subr.mxu0 0.0
    %180 = vmatpush1.msra.mxu0 0.0
    %181 = vmatprep.subr.mxu0 0.0
    %182 = vmatpush1.msra.mxu0 0.0
    %183 = vmatprep.subr.mxu0 0.0
    %184 = vmatpush1.msra.mxu0 0.0
    %185 = vmatprep.subr.mxu0 0.0
    %186 = vmatpush1.msra.mxu0 0.0
    %187 = vmatprep.subr.mxu0 0.0
    %188 = vmatpush1.msra.mxu0 0.0
    %189 = vmatprep.subr.mxu0 0.0
    %190 = vmatpush1.msra.mxu0 0.0
    %191 = vmatprep.subr.mxu0 0.0
    %192 = vmatpush1.msra.mxu0 0.0
    %193 = vmatprep.subr.mxu0 0.0
    %194 = vmatpush1.msra.mxu0 0.0
    %195 = vmatprep.subr.mxu0 0.0
    %196 = vmatpush1.msra.mxu0 %v161
    %197 = vmatprep.subr.mxu0 0.0
    %198 = vmatpush1.msra.mxu0 %v160
    %199 = vmatprep.subr.mxu0 0.0
    %200 = vmatpush1.msra.mxu0 %v159
    %201 = vmatprep.subr.mxu0 0.0
    %202 = vmatpush1.msra.mxu0 %v158
    %203 = vmatprep.subr.mxu0 0.0
    %204 = vmatpush2.msra.mxu0 0.0
    %205 = vmatprep.subr.mxu0 0.0
    %206 = vmatpush2.msra.mxu0 0.0
    %207 = vmatprep.subr.mxu0 0.0
    %208 = vmatpush2.msra.mxu0 0.0
    %209 = vmatprep.subr.mxu0 0.0
    %210 = vmatpush2.msra.mxu0 0.0
    %211 = vmatprep.subr.mxu0 0.0
    %212 = vmatpush2.msra.mxu0 0.0
    %213 = vmatprep.subr.mxu0 0.0
    %214 = vmatpush2.msra.mxu0 0.0
    %215 = vmatprep.subr.mxu0 0.0
    %216 = vmatpush2.msra.mxu0 0.0
    %217 = vmatprep.subr.mxu0 0.0
    %218 = vmatpush2.msra.mxu0 0.0
    %219 = vmatprep.subr.mxu0 0.0
    %220 = vmatpush2.msra.mxu0 0.0
    %221 = vmatprep.subr.mxu0 0.0
    %222 = vmatpush2.msra.mxu0 0.0
    %223 = vmatprep.subr.mxu0 0.0
    %224 = vmatpush2.msra.mxu0 0.0
    %225 = vmatprep.subr.mxu0 0.0
    %226 = vmatpush2.msra.mxu0 0.0
    %227 = vmatprep.subr.mxu0 0.0
    %228 = vmatpush2.msra.mxu0 0.0
    %229 = vmatprep.subr.mxu0 0.0
    %230 = vmatpush2.msra.mxu0 0.0
    %231 = vmatprep.subr.mxu0 0.0
    %232 = vmatpush2.msra.mxu0 0.0
    %233 = vmatprep.subr.mxu0 0.0
    %234 = vmatpush2.msra.mxu0 0.0
    %235 = vmatprep.mubr.f32.mxu0 0.0
    %236 = vmatmul.mubr.f32.gmra.mxu0 %v169
    %v237 = vpop.f32.mrf.mxu0
    %v238 = vadd.f32 %v165, %v237
    %v239 = vpop.f32.mrf.mxu0
    %240 = vdwg.mxu0
    %v242 = vlaneseq
    %v243 = vshrl.u32 %v242, 7
    %v244 = vsub.s32 0, %v243
    %v245 = vrot.slane %v35, %v244
    %v247 = vmul.f32 %v238, %v245
    %vm248 = vcmask 124928
    %249 = vst.msk [vmem:[#allocation2] sm:$0x7] %vm248, %v247
    // Predicated region
    $region26: #{tpu_custom_call.1} parent=1 // pred_check
      _
    $region27: #{tpu_custom_call.1} parent=1 // pred_check_branch
      %251 = sbr.rel (0) target = $region29
    $region28: #{tpu_custom_call.1} parent=1 // pred_region
      %s253 = ssub.s32 64, 64
      %254 = vsyncadd [#allocation3], %s253
      %s256 = sshll.u32 [#allocation2], 4
      %s257 = int_to_ptr.vmem [resolvable:$true] %s256
      %259 = dma.vmem_to_hbm [thread:$0]  %s257, 64, %s6, [#allocation3]
    $region29: #{tpu_custom_call.1} parent=1 // pred_fallthru
      _
    // Predicated region
    $region30: #{tpu_custom_call.1} parent=1 // pred_check
      _
    $region31: #{tpu_custom_call.1} parent=1 // pred_check_branch
      %261 = sbr.rel (0) target = $region33
    $region32: #{tpu_custom_call.1} parent=1 // pred_region
      %262 = dma.done [#allocation3], 64
    $region33: #{tpu_custom_call.1} parent=1 // pred_fallthru
      _
    %263 = vsyncpa [#allocation3], 1

</llo_original>
